<compile_context>
chip_gen: v6e
topology: v6e:2x2x1
jax: 0.10.0
libtpu: 0.0.40
codegen_flags: <defaults>
</compile_context>

<pallas_src>
import functools
import inspect

import jax
import jax.numpy as jnp
from jax.experimental import pallas as pl
from jax.experimental.pallas import tpu as pltpu

_MIB = 1024 * 1024


def _round_up(x, m):
    return (x + m - 1) // m * m


def _supports_single_buffering():
    if not hasattr(pl, "Buffered"):
        return False
    try:
        return "pipeline_mode" in inspect.signature(pl.BlockSpec).parameters
    except (TypeError, ValueError):
        return False


_HAS_PIPELINE_MODE = _supports_single_buffering()


def _vmem_capacity_bytes():
    """Per-TensorCore VMEM capacity (64 MiB on v7x, 128 MiB on v5e/v6e)."""
    try:
        cap = getattr(pltpu.get_tpu_info(), "vmem_capacity_bytes", None)
        if cap:
            return int(cap)
    except Exception:  # pragma: no cover - best-effort hardware query
        pass
    return 64 * _MIB  # conservative default (v7x per-TC)


def _layernorm_f32(x, g, b, eps):
    xf = x.astype(jnp.float32)
    mean = jnp.mean(xf, axis=-1, keepdims=True)
    xc = xf - mean
    var = jnp.mean(xc * xc, axis=-1, keepdims=True)
    return (xc * jax.lax.rsqrt(var + eps) * g.astype(jnp.float32)
            + b.astype(jnp.float32))


def _prenorm_ffn_kernel_single(x_ref, g_ref, bta_ref, w1_ref, b1_ref, w2_ref,
                               b2_ref, o_ref, *, eps):
    """Full hidden dim resident: LN -> Linear -> GELU -> Linear, direct write
    to o_ref (no accumulator / xn scratch, no pl.when)."""
    xn = _layernorm_f32(x_ref[...], g_ref[...], bta_ref[...], eps)
    h = jnp.dot(xn.astype(w1_ref.dtype), w1_ref[...],
                preferred_element_type=jnp.float32)
    h = h + b1_ref[...].astype(jnp.float32)
    h = jax.nn.gelu(h, approximate=True)       # tanh-GELU -> EUP slot
    out = jnp.dot(h.astype(w2_ref.dtype), w2_ref[...],
                  preferred_element_type=jnp.float32)
    o_ref[...] = (out + b2_ref[...].astype(jnp.float32)).astype(o_ref.dtype)


def _prenorm_ffn_kernel_tiled(x_ref, g_ref, bta_ref, w1_ref, b1_ref, w2_ref,
                              b2_ref, o_ref, xn_ref, acc_ref, *, eps):
    """Hidden dim tiled over grid axis 1: LN cached at step 0, second matmul
    accumulated into a VMEM f32 scratch, finalize on the last hidden step."""
    kj = pl.program_id(1)

    @pl.when(kj == 0)
    def _():
        xn = _layernorm_f32(x_ref[...], g_ref[...], bta_ref[...], eps)
        xn_ref[...] = xn.astype(xn_ref.dtype)
        acc_ref[...] = jnp.zeros_like(acc_ref)

    h = jnp.dot(xn_ref[...], w1_ref[...], preferred_element_type=jnp.float32)
    h = h + b1_ref[...].astype(jnp.float32)
    h = jax.nn.gelu(h, approximate=True)       # tanh-GELU -> EUP slot
    acc_ref[...] += jnp.dot(h.astype(w2_ref.dtype), w2_ref[...],
                            preferred_element_type=jnp.float32)

    @pl.when(kj == pl.num_programs(1) - 1)
    def _():
        o_ref[...] = (acc_ref[...]
                      + b2_ref[...].astype(jnp.float32)).astype(o_ref.dtype)


def _pick_hidden_tile(hidden, dim, w_bytes, weight_budget):
    """Full residency (W1+W2 held once, streamed from HBM exactly once) if it
    fits the budget; otherwise the largest 256-aligned (then 128-aligned)
    divisor of `hidden` whose double-buffered blocks fit."""
    if 2 * dim * hidden * w_bytes <= weight_budget:
        return hidden
    for align in (256, 128):
        divs = [d for d in range(align, hidden, align) if hidden % d == 0]
        fits = [d for d in divs if 4 * dim * d * w_bytes <= weight_budget]
        if fits:
            return max(fits)
    divs = [d for d in range(128, hidden, 128) if hidden % d == 0]
    return min(divs) if divs else hidden


def prenorm_feed_forward(x, gamma, beta, w1, b1, w2, b2, *, eps=1e-5, tm=256,
                         hidden_tile=None):
    """PreNorm(dim, FeedForward): FFN(LayerNorm(x)). x: (..., dim)."""
    orig_shape = x.shape
    dim = orig_shape[-1]
    hidden = w1.shape[1]
    x2d = x.reshape(-1, dim)
    n = x2d.shape[0]

    x_bytes = jnp.dtype(x.dtype).itemsize
    w_bytes = jnp.dtype(w1.dtype).itemsize

    # TODO(synk): if the real-model `dim` is < 128 the output writeback uses
    # masked vst.msk and most MXU result columns are idle; such shapes need a
    # token-folded layout instead of this token-major one.

    # Sublane packing of the token axis: 8 for 4-byte dtypes, 16 for 2-byte.
    pack = 8 if x_bytes >= 4 else 16
    n_pad = _round_up(n, pack)
    if n_pad != n:
        # Minimal pad to the sublane packing only; ragged last grid blocks are
        # handled by Pallas OOB masking (rows are fully independent: LN, GELU
        # and both matmuls are row-wise for the LHS).
        x2d = jnp.pad(x2d, ((0, n_pad - n), (0, 0)))

    # ---- generation-aware VMEM sizing -------------------------------------
    cap = _vmem_capacity_bytes()
    vmem_ceiling = max(cap - max(12 * _MIB, cap // 6), 16 * _MIB)
    big_vmem = cap > 96 * _MIB                       # v5e/v6e (128 MiB) vs v7x
    weight_budget = (min(2 * vmem_ceiling // 3, 64 * _MIB) if big_vmem
                     else min(vmem_ceiling // 2, 20 * _MIB))

    if hidden_tile is not None and hidden % int(hidden_tile) == 0:
        th = int(hidden_tile)
    else:
        th = _pick_hidden_tile(hidden, dim, w_bytes, weight_budget)
    hidden_tiles = hidden // th
    single_hidden = hidden_tiles == 1
    single_w = single_hidden and _HAS_PIPELINE_MODE

    def footprint(tm_, single_weights):
        nb = 1 if single_weights else 2
        f = 4 * tm_ * dim * x_bytes                      # x + out (2-buffered)
        f += nb * (dim * th + th + th * dim) * w_bytes   # W1 + b1 + W2 blocks
        f += 3 * dim * w_bytes                           # gamma / beta / b2
        if not single_hidden:
            f += tm_ * dim * (w_bytes + 4)               # xn + f32 acc scratch
        f += tm_ * th * (4 + w_bytes)                    # f32 h + low-prec copy
        return f

    # Token tile: larger when weights are re-streamed per token tile so the
    # weight DMA is amortized (>=768 on 128 MiB parts, >=384 on v7x).
    tm_target = tm if single_hidden else max(tm, 768 if big_vmem else 384)
    tm = max(pack, min(_round_up(tm_target, pack), n_pad))
    while tm > pack and footprint(tm, single_w) > vmem_ceiling:
        tm = max(pack, _round_up(tm // 2, pack))

    # Size the limit for the worst case (double-buffered weights) so a
    # fallback without single-buffering still fits; never exceed the chip.
    need = footprint(tm, False)
    vmem_limit = int(min(vmem_ceiling, max(need * 3 // 2, 32 * _MIB)))

    n_token_tiles = pl.cdiv(n_pad, tm)

    # ---- cost hint (weights re-streamed per token tile when hidden-tiled) --
    weight_passes = 1 if single_hidden else n_token_tiles
    cost = pl.CostEstimate(
        flops=4 * n * dim * hidden + 10 * n * dim + 10 * n * hidden,
        transcendentals=n * hidden,                      # tanh in the GELU
        bytes_accessed=int(2 * n * dim * x_bytes
                           + weight_passes * 2 * dim * hidden * w_bytes
                           + (hidden + 3 * dim) * w_bytes),
    )

    # ---- grid / specs / kernel ---------------------------------------------
    if single_hidden:
        grid = (n_token_tiles,)
        imap_x = lambda i: (i, 0)
        imap_row = lambda i: (0, 0)
        imap_w1 = lambda i: (0, 0)
        imap_b1 = lambda i: (0, 0)
        imap_w2 = lambda i: (0, 0)
        kernel = functools.partial(_prenorm_ffn_kernel_single, eps=float(eps))
        scratch = []
        dim_sem = ("parallel",)
    else:
        grid = (n_token_tiles, hidden_tiles)
        imap_x = lambda i, j: (i, 0)
        imap_row = lambda i, j: (0, 0)
        imap_w1 = lambda i, j: (0, j)
        imap_b1 = lambda i, j: (0, j)
        imap_w2 = lambda i, j: (j, 0)
        kernel = functools.partial(_prenorm_ffn_kernel_tiled, eps=float(eps))
        scratch = [pltpu.VMEM((tm, dim), w1.dtype),      # normalized x
                   pltpu.VMEM((tm, dim), jnp.float32)]   # output accumulator
        dim_sem = ("parallel", "arbitrary")

    def make_spec(shape, index_map, single_buffer):
        if single_buffer and _HAS_PIPELINE_MODE:
            return pl.BlockSpec(shape, index_map, pipeline_mode=pl.Buffered(1))
        return pl.BlockSpec(shape, index_map)

    def run(use_single_buffer):
        sb_const = use_single_buffer                     # constant block index
        sb_weights = use_single_buffer and single_hidden
        in_specs = [
            make_spec((tm, dim), imap_x, False),         # x (resident over j)
            make_spec((1, dim), imap_row, sb_const),     # gamma
            make_spec((1, dim), imap_row, sb_const),     # beta
            make_spec((dim, th), imap_w1, sb_weights),   # W1 hidden-slice
            make_spec((1, th), imap_b1, sb_weights),     # b1 hidden-slice
            make_spec((th, dim), imap_w2, sb_weights),   # W2 hidden-slice
            make_spec((1, dim), imap_row, sb_const),     # b2
        ]
        return pl.pallas_call(
            kernel,
            out_shape=jax.ShapeDtypeStruct((n_pad, dim), x.dtype),
            grid_spec=pltpu.PrefetchScalarGridSpec(
                num_scalar_prefetch=0,
                grid=grid,
                in_specs=in_specs,
                out_specs=pl.BlockSpec((tm, dim), imap_x),
                scratch_shapes=scratch,
            ),
            compiler_params=pltpu.CompilerParams(
                dimension_semantics=dim_sem,
                vmem_limit_bytes=vmem_limit,
            ),
            cost_estimate=cost,
        )(x2d, gamma, beta, w1, b1, w2, b2)

    if _HAS_PIPELINE_MODE:
        try:
            out2d = run(True)
        except Exception:  # pragma: no cover - Buffered(1) unsupported: retry
            out2d = run(False)
    else:
        out2d = run(False)

    if n_pad != n:
        out2d = out2d[:n]
    return out2d.reshape(orig_shape)


def init_params(key, dim, hidden_dim, dtype=jnp.float32):
    """Deterministic synthetic parameters.

    LayerNorm: gamma=1, beta=0 (torch defaults).  Linear weights are stored
    transposed relative to torch.nn.Linear: W1[dim, hidden], W2[hidden, dim].
    """
    k1, k2, k3, k4 = jax.random.split(key, 4)
    gamma = jnp.ones((1, dim), dtype)
    beta = jnp.zeros((1, dim), dtype)
    bound1 = 1.0 / (dim ** 0.5)
    bound2 = 1.0 / (hidden_dim ** 0.5)
    w1 = jax.random.uniform(k1, (dim, hidden_dim), dtype, -bound1, bound1)
    b1 = jax.random.uniform(k2, (1, hidden_dim), dtype, -bound1, bound1)
    w2 = jax.random.uniform(k3, (hidden_dim, dim), dtype, -bound2, bound2)
    b2 = jax.random.uniform(k4, (1, dim), dtype, -bound2, bound2)
    return gamma, beta, w1, b1, w2, b2


def prenorm_feed_forward_ref(x, gamma, beta, w1, b1, w2, b2, eps=1e-5):
    """Pure-JAX reference of the forward (dropout p=0, tanh-GELU like the
    kernel; torch.nn.GELU()'s default is the exact erf formulation)."""
    hi = jax.lax.Precision.HIGHEST
    mean = jnp.mean(x, axis=-1, keepdims=True)
    var = jnp.mean((x - mean) ** 2, axis=-1, keepdims=True)
    xn = (x - mean) * jax.lax.rsqrt(var + eps) * gamma[0] + beta[0]
    h = jnp.dot(xn, w1, precision=hi) + b1[0]
    h = jax.nn.gelu(h, approximate=True)
    return jnp.dot(h, w2, precision=hi) + b2[0]


if __name__ == "__main__":
    key = jax.random.PRNGKey(0)
    kx1, kp1, kx2, kp2 = jax.random.split(key, 4)

    # Case 1: small module shapes -> full hidden residency, direct-write path.
    batch, seq, dim, hidden = 2, 8, 32, 64
    x = jax.random.normal(kx1, (batch, seq, dim), jnp.float32)
    params = init_params(kp1, dim, hidden)
    out = jax.block_until_ready(prenorm_feed_forward(x, *params))
    ref = prenorm_feed_forward_ref(x, *params)
    assert out.shape == x.shape and out.dtype == x.dtype
    assert jnp.allclose(out, ref, atol=2e-5, rtol=2e-5), \
        float(jnp.max(jnp.abs(out - ref)))

    # Case 2: force hidden tiling to exercise the accumulating path.
    dim2, hidden2 = 128, 512
    x2 = jax.random.normal(kx2, (batch, seq, dim2), jnp.float32)
    params2 = init_params(kp2, dim2, hidden2)
    out2 = jax.block_until_ready(
        prenorm_feed_forward(x2, *params2, hidden_tile=256))
    ref2 = prenorm_feed_forward_ref(x2, *params2)
    assert out2.shape == x2.shape and out2.dtype == x2.dtype
    assert jnp.allclose(out2, ref2, atol=1e-4, rtol=1e-4), \
        float(jnp.max(jnp.abs(out2 - ref2)))

    print("KERNEL_OK")
</pallas_src>

<mosaic_0001>
module attributes {stable_mosaic.version = 11 : i64} {
  func.func @_prenorm_ffn_kernel_single(%arg0: i32, %arg1: memref<16x32xf32, #tpu.memory_space<vmem>>, %arg2: memref<1x32xf32, #tpu.memory_space<vmem>>, %arg3: memref<1x32xf32, #tpu.memory_space<vmem>>, %arg4: memref<32x64xf32, #tpu.memory_space<vmem>>, %arg5: memref<1x64xf32, #tpu.memory_space<vmem>>, %arg6: memref<64x32xf32, #tpu.memory_space<vmem>>, %arg7: memref<1x32xf32, #tpu.memory_space<vmem>>, %arg8: memref<16x32xf32, #tpu.memory_space<vmem>>) attributes {dimension_semantics = [#tpu.dimension_semantics<parallel>], iteration_bounds = array<i64: 1>, scalar_prefetch = 0 : i64, scratch_operands = 0 : i64, tpu.core_type = #tpu.core_type<tc>, window_params = [{transform_indices = @transform_0, window_bounds = array<i64: 16, 32>}, {pipeline_mode = #tpu.pipeline_mode<synchronous>, transform_indices = @transform_1, window_bounds = array<i64: 1, 32>}, {pipeline_mode = #tpu.pipeline_mode<synchronous>, transform_indices = @transform_2, window_bounds = array<i64: 1, 32>}, {pipeline_mode = #tpu.pipeline_mode<synchronous>, transform_indices = @transform_3, window_bounds = array<i64: 32, 64>}, {pipeline_mode = #tpu.pipeline_mode<synchronous>, transform_indices = @transform_4, window_bounds = array<i64: 1, 64>}, {pipeline_mode = #tpu.pipeline_mode<synchronous>, transform_indices = @transform_5, window_bounds = array<i64: 64, 32>}, {pipeline_mode = #tpu.pipeline_mode<synchronous>, transform_indices = @transform_6, window_bounds = array<i64: 1, 32>}, {transform_indices = @transform_7, window_bounds = array<i64: 16, 32>}]} {
    %c0 = arith.constant 0 : index
    %c0_0 = arith.constant 0 : index
    %0 = vector.load %arg1[%c0, %c0_0] : memref<16x32xf32, #tpu.memory_space<vmem>>, vector<16x32xf32>
    %c0_1 = arith.constant 0 : index
    %c0_2 = arith.constant 0 : index
    %1 = vector.load %arg2[%c0_1, %c0_2] : memref<1x32xf32, #tpu.memory_space<vmem>>, vector<1x32xf32>
    %c0_3 = arith.constant 0 : index
    %c0_4 = arith.constant 0 : index
    %2 = vector.load %arg3[%c0_3, %c0_4] : memref<1x32xf32, #tpu.memory_space<vmem>>, vector<1x32xf32>
    %cst = arith.constant dense<0.000000e+00> : vector<16xf32>
    %3 = vector.multi_reduction <add>, %0, %cst [1] : vector<16x32xf32> to vector<16xf32>
    %4 = vector.shape_cast %3 : vector<16xf32> to vector<16x1xf32>
    %cst_5 = arith.constant 3.200000e+01 : f32
    %5 = vector.broadcast %cst_5 : f32 to vector<16x1xf32>
    %6 = arith.divf %4, %5 : vector<16x1xf32>
    %7 = vector.broadcast %6 : vector<16x1xf32> to vector<16x32xf32>
    %8 = arith.subf %0, %7 : vector<16x32xf32>
    %9 = arith.mulf %8, %8 : vector<16x32xf32>
    %cst_6 = arith.constant dense<0.000000e+00> : vector<16xf32>
    %10 = vector.multi_reduction <add>, %9, %cst_6 [1] : vector<16x32xf32> to vector<16xf32>
    %11 = vector.shape_cast %10 : vector<16xf32> to vector<16x1xf32>
    %cst_7 = arith.constant 3.200000e+01 : f32
    %12 = vector.broadcast %cst_7 : f32 to vector<16x1xf32>
    %13 = arith.divf %11, %12 : vector<16x1xf32>
    %cst_8 = arith.constant 9.99999974E-6 : f32
    %14 = vector.broadcast %cst_8 : f32 to vector<16x1xf32>
    %15 = arith.addf %13, %14 : vector<16x1xf32>
    %16 = math.rsqrt %15 : vector<16x1xf32>
    %17 = vector.broadcast %16 : vector<16x1xf32> to vector<16x32xf32>
    %18 = arith.mulf %8, %17 : vector<16x32xf32>
    %19 = vector.broadcast %1 : vector<1x32xf32> to vector<16x32xf32>
    %20 = arith.mulf %18, %19 : vector<16x32xf32>
    %21 = vector.broadcast %2 : vector<1x32xf32> to vector<16x32xf32>
    %22 = arith.addf %20, %21 : vector<16x32xf32>
    %c0_9 = arith.constant 0 : index
    %c0_10 = arith.constant 0 : index
    %23 = vector.load %arg4[%c0_9, %c0_10] : memref<32x64xf32, #tpu.memory_space<vmem>>, vector<32x64xf32>
    %cst_11 = arith.constant dense<0.000000e+00> : vector<16x64xf32>
    %24 = tpu.matmul %22, %23, %cst_11 {dimension_numbers = #tpu.dot_dimension_numbers<[1], [0], [0], [1], [0, 0, 1, 1], [], []>} : vector<16x32xf32>, vector<32x64xf32>, vector<16x64xf32> -> vector<16x64xf32>
    %c0_12 = arith.constant 0 : index
    %c0_13 = arith.constant 0 : index
    %25 = vector.load %arg5[%c0_12, %c0_13] : memref<1x64xf32, #tpu.memory_space<vmem>>, vector<1x64xf32>
    %26 = vector.broadcast %25 : vector<1x64xf32> to vector<16x64xf32>
    %27 = arith.addf %24, %26 : vector<16x64xf32>
    %28 = arith.mulf %27, %27 : vector<16x64xf32>
    %29 = arith.mulf %27, %28 : vector<16x64xf32>
    %cst_14 = arith.constant 4.471500e-02 : f32
    %30 = vector.broadcast %cst_14 : f32 to vector<16x64xf32>
    %31 = arith.mulf %30, %29 : vector<16x64xf32>
    %32 = arith.addf %27, %31 : vector<16x64xf32>
    %cst_15 = arith.constant 0.797884583 : f32
    %33 = vector.broadcast %cst_15 : f32 to vector<16x64xf32>
    %34 = arith.mulf %33, %32 : vector<16x64xf32>
    %35 = math.tanh %34 : vector<16x64xf32>
    %cst_16 = arith.constant 1.000000e+00 : f32
    %36 = vector.broadcast %cst_16 : f32 to vector<16x64xf32>
    %37 = arith.addf %36, %35 : vector<16x64xf32>
    %cst_17 = arith.constant 5.000000e-01 : f32
    %38 = vector.broadcast %cst_17 : f32 to vector<16x64xf32>
    %39 = arith.mulf %38, %37 : vector<16x64xf32>
    %40 = arith.mulf %27, %39 : vector<16x64xf32>
    %c0_18 = arith.constant 0 : index
    %c0_19 = arith.constant 0 : index
    %41 = vector.load %arg6[%c0_18, %c0_19] : memref<64x32xf32, #tpu.memory_space<vmem>>, vector<64x32xf32>
    %cst_20 = arith.constant dense<0.000000e+00> : vector<16x32xf32>
    %42 = tpu.matmul %40, %41, %cst_20 {dimension_numbers = #tpu.dot_dimension_numbers<[1], [0], [0], [1], [0, 0, 1, 1], [], []>} : vector<16x64xf32>, vector<64x32xf32>, vector<16x32xf32> -> vector<16x32xf32>
    %c0_21 = arith.constant 0 : index
    %c0_22 = arith.constant 0 : index
    %43 = vector.load %arg7[%c0_21, %c0_22] : memref<1x32xf32, #tpu.memory_space<vmem>>, vector<1x32xf32>
    %44 = vector.broadcast %43 : vector<1x32xf32> to vector<16x32xf32>
    %45 = arith.addf %42, %44 : vector<16x32xf32>
    %c0_23 = arith.constant 0 : index
    %c0_24 = arith.constant 0 : index
    %46 = vector.load %arg8[%c0_23, %c0_24] : memref<16x32xf32, #tpu.memory_space<vmem>>, vector<16x32xf32>
    tpu.vector_store %arg8[%c0_23, %c0_24], %45 {strides = array<i32>} : memref<16x32xf32, #tpu.memory_space<vmem>>, vector<16x32xf32>,
    return
  }
  func.func @transform_0(%arg0: i32) -> (i32, i32) {
    %c0_i32 = arith.constant 0 : i32
    %c0_i32_0 = arith.constant 0 : i32
    return %arg0, %c0_i32 : i32, i32
  }
  func.func @transform_1(%arg0: i32) -> (i32, i32) {
    %c0_i32 = arith.constant 0 : i32
    %c0_i32_0 = arith.constant 0 : i32
    %c0_i32_1 = arith.constant 0 : i32
    return %c0_i32, %c0_i32_0 : i32, i32
  }
  func.func @transform_2(%arg0: i32) -> (i32, i32) {
    %c0_i32 = arith.constant 0 : i32
    %c0_i32_0 = arith.constant 0 : i32
    %c0_i32_1 = arith.constant 0 : i32
    return %c0_i32, %c0_i32_0 : i32, i32
  }
  func.func @transform_3(%arg0: i32) -> (i32, i32) {
    %c0_i32 = arith.constant 0 : i32
    %c0_i32_0 = arith.constant 0 : i32
    %c0_i32_1 = arith.constant 0 : i32
    return %c0_i32, %c0_i32_0 : i32, i32
  }
  func.func @transform_4(%arg0: i32) -> (i32, i32) {
    %c0_i32 = arith.constant 0 : i32
    %c0_i32_0 = arith.constant 0 : i32
    %c0_i32_1 = arith.constant 0 : i32
    return %c0_i32, %c0_i32_0 : i32, i32
  }
  func.func @transform_5(%arg0: i32) -> (i32, i32) {
    %c0_i32 = arith.constant 0 : i32
    %c0_i32_0 = arith.constant 0 : i32
    %c0_i32_1 = arith.constant 0 : i32
    return %c0_i32, %c0_i32_0 : i32, i32
  }
  func.func @transform_6(%arg0: i32) -> (i32, i32) {
    %c0_i32 = arith.constant 0 : i32
    %c0_i32_0 = arith.constant 0 : i32
    %c0_i32_1 = arith.constant 0 : i32
    return %c0_i32, %c0_i32_0 : i32, i32
  }
  func.func @transform_7(%arg0: i32) -> (i32, i32) {
    %c0_i32 = arith.constant 0 : i32
    %c0_i32_0 = arith.constant 0 : i32
    return %arg0, %c0_i32 : i32, i32
  }
}

module attributes {stable_mosaic.version = 11 : i64} {
  func.func @_prenorm_ffn_kernel_single(%arg0: i32, %arg1: memref<16x32xf32, #tpu.memory_space<vmem>>, %arg2: memref<1x32xf32, #tpu.memory_space<vmem>>, %arg3: memref<1x32xf32, #tpu.memory_space<vmem>>, %arg4: memref<32x64xf32, #tpu.memory_space<vmem>>, %arg5: memref<1x64xf32, #tpu.memory_space<vmem>>, %arg6: memref<64x32xf32, #tpu.memory_space<vmem>>, %arg7: memref<1x32xf32, #tpu.memory_space<vmem>>, %arg8: memref<16x32xf32, #tpu.memory_space<vmem>>) attributes {dimension_semantics = [#tpu.dimension_semantics<parallel>], iteration_bounds = array<i64: 1>, scalar_prefetch = 0 : i64, scratch_operands = 0 : i64, tpu.core_type = #tpu.core_type<tc>, window_params = [{transform_indices = @transform_0, window_bounds = array<i64: 16, 32>}, {pipeline_mode = #tpu.pipeline_mode<synchronous>, transform_indices = @transform_1, window_bounds = array<i64: 1, 32>}, {pipeline_mode = #tpu.pipeline_mode<synchronous>, transform_indices = @transform_2, window_bounds = array<i64: 1, 32>}, {pipeline_mode = #tpu.pipeline_mode<synchronous>, transform_indices = @transform_3, window_bounds = array<i64: 32, 64>}, {pipeline_mode = #tpu.pipeline_mode<synchronous>, transform_indices = @transform_4, window_bounds = array<i64: 1, 64>}, {pipeline_mode = #tpu.pipeline_mode<synchronous>, transform_indices = @transform_5, window_bounds = array<i64: 64, 32>}, {pipeline_mode = #tpu.pipeline_mode<synchronous>, transform_indices = @transform_6, window_bounds = array<i64: 1, 32>}, {transform_indices = @transform_7, window_bounds = array<i64: 16, 32>}]} {
    %c0 = arith.constant 0 : index
    %c0_0 = arith.constant 0 : index
    %0 = vector.load %arg1[%c0, %c0_0] : memref<16x32xf32, #tpu.memory_space<vmem>>, vector<16x32xf32>
    %c0_1 = arith.constant 0 : index
    %c0_2 = arith.constant 0 : index
    %1 = vector.load %arg2[%c0_1, %c0_2] : memref<1x32xf32, #tpu.memory_space<vmem>>, vector<1x32xf32>
    %c0_3 = arith.constant 0 : index
    %c0_4 = arith.constant 0 : index
    %2 = vector.load %arg3[%c0_3, %c0_4] : memref<1x32xf32, #tpu.memory_space<vmem>>, vector<1x32xf32>
    %cst = arith.constant dense<0.000000e+00> : vector<16xf32>
    %3 = vector.multi_reduction <add>, %0, %cst [1] : vector<16x32xf32> to vector<16xf32>
    %4 = vector.shape_cast %3 : vector<16xf32> to vector<16x1xf32>
    %cst_5 = arith.constant 3.200000e+01 : f32
    %5 = vector.broadcast %cst_5 : f32 to vector<16x1xf32>
    %6 = arith.divf %4, %5 : vector<16x1xf32>
    %7 = vector.broadcast %6 : vector<16x1xf32> to vector<16x32xf32>
    %8 = arith.subf %0, %7 : vector<16x32xf32>
    %9 = arith.mulf %8, %8 : vector<16x32xf32>
    %cst_6 = arith.constant dense<0.000000e+00> : vector<16xf32>
    %10 = vector.multi_reduction <add>, %9, %cst_6 [1] : vector<16x32xf32> to vector<16xf32>
    %11 = vector.shape_cast %10 : vector<16xf32> to vector<16x1xf32>
    %cst_7 = arith.constant 3.200000e+01 : f32
    %12 = vector.broadcast %cst_7 : f32 to vector<16x1xf32>
    %13 = arith.divf %11, %12 : vector<16x1xf32>
    %cst_8 = arith.constant 9.99999974E-6 : f32
    %14 = vector.broadcast %cst_8 : f32 to vector<16x1xf32>
    %15 = arith.addf %13, %14 : vector<16x1xf32>
    %16 = math.rsqrt %15 : vector<16x1xf32>
    %17 = vector.broadcast %16 : vector<16x1xf32> to vector<16x32xf32>
    %18 = arith.mulf %8, %17 : vector<16x32xf32>
    %19 = vector.broadcast %1 : vector<1x32xf32> to vector<16x32xf32>
    %20 = arith.mulf %18, %19 : vector<16x32xf32>
    %21 = vector.broadcast %2 : vector<1x32xf32> to vector<16x32xf32>
    %22 = arith.addf %20, %21 : vector<16x32xf32>
    %c0_9 = arith.constant 0 : index
    %c0_10 = arith.constant 0 : index
    %23 = vector.load %arg4[%c0_9, %c0_10] : memref<32x64xf32, #tpu.memory_space<vmem>>, vector<32x64xf32>
    %cst_11 = arith.constant dense<0.000000e+00> : vector<16x64xf32>
    %24 = tpu.matmul %22, %23, %cst_11 {dimension_numbers = #tpu.dot_dimension_numbers<[1], [0], [0], [1], [0, 0, 1, 1], [], []>} : vector<16x32xf32>, vector<32x64xf32>, vector<16x64xf32> -> vector<16x64xf32>
    %c0_12 = arith.constant 0 : index
    %c0_13 = arith.constant 0 : index
    %25 = vector.load %arg5[%c0_12, %c0_13] : memref<1x64xf32, #tpu.memory_space<vmem>>, vector<1x64xf32>
    %26 = vector.broadcast %25 : vector<1x64xf32> to vector<16x64xf32>
    %27 = arith.addf %24, %26 : vector<16x64xf32>
    %28 = arith.mulf %27, %27 : vector<16x64xf32>
    %29 = arith.mulf %27, %28 : vector<16x64xf32>
    %cst_14 = arith.constant 4.471500e-02 : f32
    %30 = vector.broadcast %cst_14 : f32 to vector<16x64xf32>
    %31 = arith.mulf %30, %29 : vector<16x64xf32>
    %32 = arith.addf %27, %31 : vector<16x64xf32>
    %cst_15 = arith.constant 0.797884583 : f32
    %33 = vector.broadcast %cst_15 : f32 to vector<16x64xf32>
    %34 = arith.mulf %33, %32 : vector<16x64xf32>
    %35 = math.tanh %34 : vector<16x64xf32>
    %cst_16 = arith.constant 1.000000e+00 : f32
    %36 = vector.broadcast %cst_16 : f32 to vector<16x64xf32>
    %37 = arith.addf %36, %35 : vector<16x64xf32>
    %cst_17 = arith.constant 5.000000e-01 : f32
    %38 = vector.broadcast %cst_17 : f32 to vector<16x64xf32>
    %39 = arith.mulf %38, %37 : vector<16x64xf32>
    %40 = arith.mulf %27, %39 : vector<16x64xf32>
    %c0_18 = arith.constant 0 : index
    %c0_19 = arith.constant 0 : index
    %41 = vector.load %arg6[%c0_18, %c0_19] : memref<64x32xf32, #tpu.memory_space<vmem>>, vector<64x32xf32>
    %cst_20 = arith.constant dense<0.000000e+00> : vector<16x32xf32>
    %42 = tpu.matmul %40, %41, %cst_20 {dimension_numbers = #tpu.dot_dimension_numbers<[1], [0], [0], [1], [0, 0, 1, 1], [], []>} : vector<16x64xf32>, vector<64x32xf32>, vector<16x32xf32> -> vector<16x32xf32>
    %c0_21 = arith.constant 0 : index
    %c0_22 = arith.constant 0 : index
    %43 = vector.load %arg7[%c0_21, %c0_22] : memref<1x32xf32, #tpu.memory_space<vmem>>, vector<1x32xf32>
    %44 = vector.broadcast %43 : vector<1x32xf32> to vector<16x32xf32>
    %45 = arith.addf %42, %44 : vector<16x32xf32>
    %c0_23 = arith.constant 0 : index
    %c0_24 = arith.constant 0 : index
    %46 = vector.load %arg8[%c0_23, %c0_24] : memref<16x32xf32, #tpu.memory_space<vmem>>, vector<16x32xf32>
    tpu.vector_store %arg8[%c0_23, %c0_24], %45 {strides = array<i32>} : memref<16x32xf32, #tpu.memory_space<vmem>>, vector<16x32xf32>,
    return
  }
  func.func @transform_0(%arg0: i32) -> (i32, i32) {
    %c0_i32 = arith.constant 0 : i32
    %c0_i32_0 = arith.constant 0 : i32
    return %arg0, %c0_i32 : i32, i32
  }
  func.func @transform_1(%arg0: i32) -> (i32, i32) {
    %c0_i32 = arith.constant 0 : i32
    %c0_i32_0 = arith.constant 0 : i32
    %c0_i32_1 = arith.constant 0 : i32
    return %c0_i32, %c0_i32_0 : i32, i32
  }
  func.func @transform_2(%arg0: i32) -> (i32, i32) {
    %c0_i32 = arith.constant 0 : i32
    %c0_i32_0 = arith.constant 0 : i32
    %c0_i32_1 = arith.constant 0 : i32
    return %c0_i32, %c0_i32_0 : i32, i32
  }
  func.func @transform_3(%arg0: i32) -> (i32, i32) {
    %c0_i32 = arith.constant 0 : i32
    %c0_i32_0 = arith.constant 0 : i32
    %c0_i32_1 = arith.constant 0 : i32
    return %c0_i32, %c0_i32_0 : i32, i32
  }
  func.func @transform_4(%arg0: i32) -> (i32, i32) {
    %c0_i32 = arith.constant 0 : i32
    %c0_i32_0 = arith.constant 0 : i32
    %c0_i32_1 = arith.constant 0 : i32
    return %c0_i32, %c0_i32_0 : i32, i32
  }
  func.func @transform_5(%arg0: i32) -> (i32, i32) {
    %c0_i32 = arith.constant 0 : i32
    %c0_i32_0 = arith.constant 0 : i32
    %c0_i32_1 = arith.constant 0 : i32
    return %c0_i32, %c0_i32_0 : i32, i32
  }
  func.func @transform_6(%arg0: i32) -> (i32, i32) {
    %c0_i32 = arith.constant 0 : i32
    %c0_i32_0 = arith.constant 0 : i32
    %c0_i32_1 = arith.constant 0 : i32
    return %c0_i32, %c0_i32_0 : i32, i32
  }
  func.func @transform_7(%arg0: i32) -> (i32, i32) {
    %c0_i32 = arith.constant 0 : i32
    %c0_i32_0 = arith.constant 0 : i32
    return %arg0, %c0_i32 : i32, i32
  }
}

</mosaic_0001>

<llo_original>
// kernel: tpu_custom_call.1
$region0: #{tpu_custom_call.1}
  #allocation0 [shape = 'u32[]', space=smem, size = 0x4, offset = 0x4, fixed_abs, tag = 'smem constant byte address 0x4 - core index']
  #allocation1 [shape = 'u32[144,128]{1,0:T(1,128)}', space=vmem, size = 0x12000, scoped, tag = 'internal scratch']
  %s0 = inlined_call_operand.vmem [shape: f32[16,32], index: 0, kind: input, shape index: {}]
  %s1 = inlined_call_operand.vmem [shape: f32[1,32], index: 1, kind: input, shape index: {}]
  %s2 = inlined_call_operand.vmem [shape: f32[1,32], index: 2, kind: input, shape index: {}]
  %s3 = inlined_call_operand.vmem [shape: f32[32,64], index: 3, kind: input, shape index: {}]
  %s4 = inlined_call_operand.vmem [shape: f32[1,64], index: 4, kind: input, shape index: {}]
  %s5 = inlined_call_operand.vmem [shape: f32[64,32], index: 5, kind: input, shape index: {}]
  %s6 = inlined_call_operand.vmem [shape: f32[1,32], index: 6, kind: input, shape index: {}]
  %s7 = inlined_call_operand.hbm [shape: f32[16,32], index: 7, kind: output, shape index: {}]
  %s8 = sld [smem:[#allocation0]]
  $region38: #{tpu_custom_call.1} parent=0
    _
  %s10 = ssub.s32 1, %s8
  %s11 = scalar_select 0, %s10, %s8
  $region1: #{tpu_custom_call.1} parent=0
    #allocation2 [shape = 'u8[8192]{0}', space=vmem, size = 0x2000, scoped, tag = 'output window, operand 0, single buffered']
    #allocation3 [shape = 's32[1]{0}', space=sflag, size = 0x4, scoped, tag = 'scoped memory for tpu_custom_call.1']
    %12 = vsyncpa [#allocation3], 0
    // Predicated region
    $region2: #{tpu_custom_call.1} parent=1 // pred_check
      _
    $region3: #{tpu_custom_call.1} parent=1 // pred_check_branch
      %14 = sbr.rel (0) target = $region5
    $region4: #{tpu_custom_call.1} parent=1 // pred_region
      _
    $region5: #{tpu_custom_call.1} parent=1 // pred_fallthru
      _
    // Predicated region
    $region6: #{tpu_custom_call.1} parent=1 // pred_check
      _
    $region7: #{tpu_custom_call.1} parent=1 // pred_check_branch
      %16 = sbr.rel (0) target = $region9
    $region8: #{tpu_custom_call.1} parent=1 // pred_region
      _
    $region9: #{tpu_custom_call.1} parent=1 // pred_fallthru
      _
    // Predicated region
    $region10: #{tpu_custom_call.1} parent=1 // pred_check
      _
    $region11: #{tpu_custom_call.1} parent=1 // pred_check_branch
      %18 = sbr.rel (0) target = $region13
    $region12: #{tpu_custom_call.1} parent=1 // pred_region
      _
    $region13: #{tpu_custom_call.1} parent=1 // pred_fallthru
      _
    // Predicated region
    $region14: #{tpu_custom_call.1} parent=1 // pred_check
      _
    $region15: #{tpu_custom_call.1} parent=1 // pred_check_branch
      %20 = sbr.rel (0) target = $region17
    $region16: #{tpu_custom_call.1} parent=1 // pred_region
      _
    $region17: #{tpu_custom_call.1} parent=1 // pred_fallthru
      _
    // Predicated region
    $region18: #{tpu_custom_call.1} parent=1 // pred_check
      _
    $region19: #{tpu_custom_call.1} parent=1 // pred_check_branch
      %22 = sbr.rel (0) target = $region21
    $region20: #{tpu_custom_call.1} parent=1 // pred_region
      _
    $region21: #{tpu_custom_call.1} parent=1 // pred_fallthru
      _
    // Predicated region
    $region22: #{tpu_custom_call.1} parent=1 // pred_check
      _
    $region23: #{tpu_custom_call.1} parent=1 // pred_check_branch
      %24 = sbr.rel (0) target = $region25
    $region24: #{tpu_custom_call.1} parent=1 // pred_region
      _
    $region25: #{tpu_custom_call.1} parent=1 // pred_fallthru
      _
    // Predicated region
    $region26: #{tpu_custom_call.1} parent=1 // pred_check
      _
    $region27: #{tpu_custom_call.1} parent=1 // pred_check_branch
      %26 = sbr.rel (0) target = $region29
    $region28: #{tpu_custom_call.1} parent=1 // pred_region
      _
    $region29: #{tpu_custom_call.1} parent=1 // pred_fallthru
      _
    %v27 = vld [vmem:[%s0] sm:$0xff]
    %v28 = vld [vmem:[%s0 + $0x8] sm:$0xff]
    %v29 = vld [vmem:[%s1] sm:$0x1]
    %v30 = vld [vmem:[%s2] sm:$0x1]
    %vm31 = vcmask 261120
    %v32 = vsel %vm31, %v27, 0.0
    %33 = vadd.xlane.f32.xlu0 %v32
    %v34 = vpop.xlane.xlu0 %33
    %v35 = vsel %vm31, %v28, 0.0
    %36 = vadd.xlane.f32.xlu0 %v35
    %v37 = vpop.xlane.xlu0 %36
    %v38 = vrcp.pop 32.0
    %v39 = vmul.f32 %v34, %v38
    %v40 = vmul.f32 %v37, %v38
    %v41 = vsub.f32 %v27, %v39
    %v42 = vsub.f32 %v28, %v40
    %v43 = vmul.f32 %v41, %v41
    %v44 = vmul.f32 %v42, %v42
    %v45 = vsel %vm31, %v43, 0.0
    %46 = vadd.xlane.f32.xlu0 %v45
    %v47 = vpop.xlane.xlu0 %46
    %v48 = vsel %vm31, %v44, 0.0
    %49 = vadd.xlane.f32.xlu0 %v48
    %v50 = vpop.xlane.xlu0 %49
    %v51 = vmul.f32 %v47, %v38
    %v52 = vmul.f32 %v50, %v38
    %v53 = vadd.f32 %v51, 1e-05
    %v54 = vadd.f32 %v52, 1e-05
    %v55 = vrsqrt.pop %v53
    %v56 = vrsqrt.pop %v54
    %v57 = vmul.f32 %v41, %v55
    %v58 = vmul.f32 %v42, %v56
    %v60 = vlaneseq
    %v61 = vshrl.u32 %v60, 7
    %v62 = vsub.s32 0, %v61
    %v63 = vrot.slane %v29, %v62
    %v65 = vmul.f32 %v57, %v63
    %v66 = vmul.f32 %v58, %v63
    %v68 = vlaneseq
    %v69 = vshrl.u32 %v68, 7
    %v70 = vsub.s32 0, %v69
    %v71 = vrot.slane %v30, %v70
    %v73 = vadd.f32 %v65, %v71
    %v74 = vadd.f32 %v66, %v71
    %v75 = vld [vmem:[%s3] sm:$0xff]
    %v76 = vld [vmem:[%s3 + $0x8] sm:$0xff]
    %v77 = vld [vmem:[%s3 + $0x10] sm:$0xff]
    %v78 = vld [vmem:[%s3 + $0x18] sm:$0xff]
    %v79 = vld [vmem:[%s4] sm:$0x1]
    %v81 = vlaneseq
    %v82 = vshrl.u32 %v81, 7
    %v83 = vsub.s32 0, %v82
    %v84 = vrot.slane %v79, %v83
    %v87 = vsel %vm31, %v73, 0
    %v90 = vsel %vm31, %v74, 0
    %92 = vmatprep.subr.mxu0 0.0
    %93 = vmatpush1.msra.mxu0 0.0
    %94 = vmatprep.subr.mxu0 0.0
    %95 = vmatpush1.msra.mxu0 0.0
    %96 = vmatprep.subr.mxu0 0.0
    %97 = vmatpush1.msra.mxu0 0.0
    %98 = vmatprep.subr.mxu0 0.0
    %99 = vmatpush1.msra.mxu0 0.0
    %100 = vmatprep.subr.mxu0 0.0
    %101 = vmatpush1.msra.mxu0 0.0
    %102 = vmatprep.subr.mxu0 0.0
    %103 = vmatpush1.msra.mxu0 0.0
    %104 = vmatprep.subr.mxu0 0.0
    %105 = vmatpush1.msra.mxu0 0.0
    %106 = vmatprep.subr.mxu0 0.0
    %107 = vmatpush1.msra.mxu0 0.0
    %108 = vmatprep.subr.mxu0 0.0
    %109 = vmatpush1.msra.mxu0 0.0
    %110 = vmatprep.subr.mxu0 0.0
    %111 = vmatpush1.msra.mxu0 0.0
    %112 = vmatprep.subr.mxu0 0.0
    %113 = vmatpush1.msra.mxu0 0.0
    %114 = vmatprep.subr.mxu0 0.0
    %115 = vmatpush1.msra.mxu0 0.0
    %116 = vmatprep.subr.mxu0 0.0
    %117 = vmatpush1.msra.mxu0 %v78
    %118 = vmatprep.subr.mxu0 0.0
    %119 = vmatpush1.msra.mxu0 %v77
    %120 = vmatprep.subr.mxu0 0.0
    %121 = vmatpush1.msra.mxu0 %v76
    %122 = vmatprep.subr.mxu0 0.0
    %123 = vmatpush1.msra.mxu0 %v75
    %124 = vmatprep.subr.mxu0 0.0
    %125 = vmatpush2.msra.mxu0 0.0
    %126 = vmatprep.subr.mxu0 0.0
    %127 = vmatpush2.msra.mxu0 0.0
    %128 = vmatprep.subr.mxu0 0.0
    %129 = vmatpush2.msra.mxu0 0.0
    %130 = vmatprep.subr.mxu0 0.0
    %131 = vmatpush2.msra.mxu0 0.0
    %132 = vmatprep.subr.mxu0 0.0
    %133 = vmatpush2.msra.mxu0 0.0
    %134 = vmatprep.subr.mxu0 0.0
    %135 = vmatpush2.msra.mxu0 0.0
    %136 = vmatprep.subr.mxu0 0.0
    %137 = vmatpush2.msra.mxu0 0.0
    %138 = vmatprep.subr.mxu0 0.0
    %139 = vmatpush2.msra.mxu0 0.0
    %140 = vmatprep.subr.mxu0 0.0
    %141 = vmatpush2.msra.mxu0 0.0
    %142 = vmatprep.subr.mxu0 0.0
    %143 = vmatpush2.msra.mxu0 0.0
    %144 = vmatprep.subr.mxu0 0.0
    %145 = vmatpush2.msra.mxu0 0.0
    %146 = vmatprep.subr.mxu0 0.0
    %147 = vmatpush2.msra.mxu0 0.0
    %148 = vmatprep.subr.mxu0 0.0
    %149 = vmatpush2.msra.mxu0 0.0
    %150 = vmatprep.subr.mxu0 0.0
    %151 = vmatpush2.msra.mxu0 0.0
    %152 = vmatprep.subr.mxu0 0.0
    %153 = vmatpush2.msra.mxu0 0.0
    %154 = vmatprep.subr.mxu0 0.0
    %155 = vmatpush2.msra.mxu0 0.0
    %156 = vmatprep.mubr.f32.mxu0 0.0
    %157 = vmatmul.mubr.f32.gmra.mxu0 %v87
    %v158 = vpop.f32.mrf.mxu0
    %v159 = vadd.f32 %v84, %v158
    %v160 = vpop.f32.mrf.mxu0
    %161 = vmatprep.mubr.f32.mxu0 0.0
    %162 = vmatmul.mubr.f32.gmra.mxu0 %v90
    %v163 = vpop.f32.mrf.mxu0
    %v164 = vadd.f32 %v84, %v163
    %v165 = vpop.f32.mrf.mxu0
    %166 = vdwg.mxu0
    %v167 = vmul.f32 %v159, %v159
    %v168 = vmul.f32 %v164, %v164
    %v169 = vmul.f32 %v159, %v167
    %v170 = vmul.f32 %v164, %v168
    %v171 = vmul.f32 %v169, 0.044715
    %v172 = vmul.f32 %v170, 0.044715
    %v173 = vadd.f32 %v159, %v171
    %v174 = vadd.f32 %v164, %v172
    %v175 = vmul.f32 %v173, 0.7978846
    %v176 = vmul.f32 %v174, 0.7978846
    %v177 = vtanh.pop %v175
    %v178 = vtanh.pop %v176
    %v179 = vadd.f32 %v177, 1.0
    %v180 = vadd.f32 %v178, 1.0
    %v181 = vmul.f32 %v179, 0.5
    %v182 = vmul.f32 %v180, 0.5
    %v183 = vmul.f32 %v159, %v181
    %v184 = vmul.f32 %v164, %v182
    %v185 = vld [vmem:[%s5] sm:$0xff]
    %v186 = vld [vmem:[%s5 + $0x8] sm:$0xff]
    %v187 = vld [vmem:[%s5 + $0x10] sm:$0xff]
    %v188 = vld [vmem:[%s5 + $0x18] sm:$0xff]
    %v189 = vld [vmem:[%s5 + $0x20] sm:$0xff]
    %v190 = vld [vmem:[%s5 + $0x28] sm:$0xff]
    %v191 = vld [vmem:[%s5 + $0x30] sm:$0xff]
    %v192 = vld [vmem:[%s5 + $0x38] sm:$0xff]
    %v193 = vld [vmem:[%s6] sm:$0x1]
    %v195 = vlaneseq
    %v196 = vshrl.u32 %v195, 7
    %v197 = vsub.s32 0, %v196
    %v198 = vrot.slane %v193, %v197
    %vm200 = vcmask 523264
    %v202 = vsel %vm200, %v183, 0
    %v205 = vsel %vm200, %v184, 0
    %207 = vmatprep.subr.mxu0 0.0
    %208 = vmatpush1.msra.mxu0 0.0
    %209 = vmatprep.subr.mxu0 0.0
    %210 = vmatpush1.msra.mxu0 0.0
    %211 = vmatprep.subr.mxu0 0.0
    %212 = vmatpush1.msra.mxu0 0.0
    %213 = vmatprep.subr.mxu0 0.0
    %214 = vmatpush1.msra.mxu0 0.0
    %215 = vmatprep.subr.mxu0 0.0
    %216 = vmatpush1.msra.mxu0 0.0
    %217 = vmatprep.subr.mxu0 0.0
    %218 = vmatpush1.msra.mxu0 0.0
    %219 = vmatprep.subr.mxu0 0.0
    %220 = vmatpush1.msra.mxu0 0.0
    %221 = vmatprep.subr.mxu0 0.0
    %222 = vmatpush1.msra.mxu0 0.0
    %223 = vmatprep.subr.mxu0 0.0
    %224 = vmatpush1.msra.mxu0 %v192
    %225 = vmatprep.subr.mxu0 0.0
    %226 = vmatpush1.msra.mxu0 %v191
    %227 = vmatprep.subr.mxu0 0.0
    %228 = vmatpush1.msra.mxu0 %v190
    %229 = vmatprep.subr.mxu0 0.0
    %230 = vmatpush1.msra.mxu0 %v189
    %231 = vmatprep.subr.mxu0 0.0
    %232 = vmatpush1.msra.mxu0 %v188
    %233 = vmatprep.subr.mxu0 0.0
    %234 = vmatpush1.msra.mxu0 %v187
    %235 = vmatprep.subr.mxu0 0.0
    %236 = vmatpush1.msra.mxu0 %v186
    %237 = vmatprep.subr.mxu0 0.0
    %238 = vmatpush1.msra.mxu0 %v185
    %239 = vmatprep.subr.mxu0 0.0
    %240 = vmatpush2.msra.mxu0 0.0
    %241 = vmatprep.subr.mxu0 0.0
    %242 = vmatpush2.msra.mxu0 0.0
    %243 = vmatprep.subr.mxu0 0.0
    %244 = vmatpush2.msra.mxu0 0.0
    %245 = vmatprep.subr.mxu0 0.0
    %246 = vmatpush2.msra.mxu0 0.0
    %247 = vmatprep.subr.mxu0 0.0
    %248 = vmatpush2.msra.mxu0 0.0
    %249 = vmatprep.subr.mxu0 0.0
    %250 = vmatpush2.msra.mxu0 0.0
    %251 = vmatprep.subr.mxu0 0.0
    %252 = vmatpush2.msra.mxu0 0.0
    %253 = vmatprep.subr.mxu0 0.0
    %254 = vmatpush2.msra.mxu0 0.0
    %255 = vmatprep.subr.mxu0 0.0
    %256 = vmatpush2.msra.mxu0 0.0
    %257 = vmatprep.subr.mxu0 0.0
    %258 = vmatpush2.msra.mxu0 0.0
    %259 = vmatprep.subr.mxu0 0.0
    %260 = vmatpush2.msra.mxu0 0.0
    %261 = vmatprep.subr.mxu0 0.0
    %262 = vmatpush2.msra.mxu0 0.0
    %263 = vmatprep.subr.mxu0 0.0
    %264 = vmatpush2.msra.mxu0 0.0
    %265 = vmatprep.subr.mxu0 0.0
    %266 = vmatpush2.msra.mxu0 0.0
    %267 = vmatprep.subr.mxu0 0.0
    %268 = vmatpush2.msra.mxu0 0.0
    %269 = vmatprep.subr.mxu0 0.0
    %270 = vmatpush2.msra.mxu0 0.0
    %271 = vmatprep.mubr.f32.mxu0 0.0
    %272 = vmatmul.mubr.f32.gmra.mxu0 %v202
    %v273 = vpop.f32.mrf.mxu0
    %v274 = vadd.f32 %v198, %v273
    %v275 = vpop.f32.mrf.mxu0
    %276 = vmatprep.mubr.f32.mxu0 0.0
    %277 = vmatmul.mubr.f32.gmra.mxu0 %v205
    %v278 = vpop.f32.mrf.mxu0
    %v279 = vadd.f32 %v198, %v278
    %v280 = vpop.f32.mrf.mxu0
    %281 = vdwg.mxu0
    %282 = vst.msk [vmem:[#allocation2] sm:$0xff] %vm31, %v274
    %283 = vst.msk [vmem:[#allocation2 + $0x8] sm:$0xff] %vm31, %v279
    // Predicated region
    $region30: #{tpu_custom_call.1} parent=1 // pred_check
      _
    $region31: #{tpu_custom_call.1} parent=1 // pred_check_branch
      %285 = sbr.rel (0) target = $region33
    $region32: #{tpu_custom_call.1} parent=1 // pred_region
      %s287 = ssub.s32 256, 256
      %288 = vsyncadd [#allocation3], %s287
      %s289 = sshll.u32 [#allocation2], 4
      %s290 = int_to_ptr.vmem [resolvable:$true] %s289
      %295 = dma.vmem_to_hbm [thread:$0]  %s290, 256, %s7, [#allocation3], 128, 128, 8
    $region33: #{tpu_custom_call.1} parent=1 // pred_fallthru
      _
    // Predicated region
    $region34: #{tpu_custom_call.1} parent=1 // pred_check
      _
    $region35: #{tpu_custom_call.1} parent=1 // pred_check_branch
      %297 = sbr.rel (0) target = $region37
    $region36: #{tpu_custom_call.1} parent=1 // pred_region
      %298 = dma.done [#allocation3], 256
    $region37: #{tpu_custom_call.1} parent=1 // pred_fallthru
      _
    %299 = vsyncpa [#allocation3], 1

// kernel: tpu_custom_call.1
$region0: #{tpu_custom_call.1}
  #allocation0 [shape = 'u32[]', space=smem, size = 0x4, offset = 0x4, fixed_abs, tag = 'smem constant byte address 0x4 - core index']
  #allocation1 [shape = 'u32[144,128]{1,0:T(1,128)}', space=vmem, size = 0x12000, scoped, tag = 'internal scratch']
  %s0 = inlined_call_operand.vmem [shape: f32[16,32], index: 0, kind: input, shape index: {}]
  %s1 = inlined_call_operand.vmem [shape: f32[1,32], index: 1, kind: input, shape index: {}]
  %s2 = inlined_call_operand.vmem [shape: f32[1,32], index: 2, kind: input, shape index: {}]
  %s3 = inlined_call_operand.vmem [shape: f32[32,64], index: 3, kind: input, shape index: {}]
  %s4 = inlined_call_operand.vmem [shape: f32[1,64], index: 4, kind: input, shape index: {}]
  %s5 = inlined_call_operand.vmem [shape: f32[64,32], index: 5, kind: input, shape index: {}]
  %s6 = inlined_call_operand.vmem [shape: f32[1,32], index: 6, kind: input, shape index: {}]
  %s7 = inlined_call_operand.hbm [shape: f32[16,32], index: 7, kind: output, shape index: {}]
  %s8 = sld [smem:[#allocation0]]
  $region38: #{tpu_custom_call.1} parent=0
    _
  %s10 = ssub.s32 1, %s8
  %s11 = scalar_select 0, %s10, %s8
  $region1: #{tpu_custom_call.1} parent=0
    #allocation2 [shape = 'u8[8192]{0}', space=vmem, size = 0x2000, scoped, tag = 'output window, operand 0, single buffered']
    #allocation3 [shape = 's32[1]{0}', space=sflag, size = 0x4, scoped, tag = 'scoped memory for tpu_custom_call.1']
    %12 = vsyncpa [#allocation3], 0
    // Predicated region
    $region2: #{tpu_custom_call.1} parent=1 // pred_check
      _
    $region3: #{tpu_custom_call.1} parent=1 // pred_check_branch
      %14 = sbr.rel (0) target = $region5
    $region4: #{tpu_custom_call.1} parent=1 // pred_region
      _
    $region5: #{tpu_custom_call.1} parent=1 // pred_fallthru
      _
    // Predicated region
    $region6: #{tpu_custom_call.1} parent=1 // pred_check
      _
    $region7: #{tpu_custom_call.1} parent=1 // pred_check_branch
      %16 = sbr.rel (0) target = $region9
    $region8: #{tpu_custom_call.1} parent=1 // pred_region
      _
    $region9: #{tpu_custom_call.1} parent=1 // pred_fallthru
      _
    // Predicated region
    $region10: #{tpu_custom_call.1} parent=1 // pred_check
      _
    $region11: #{tpu_custom_call.1} parent=1 // pred_check_branch
      %18 = sbr.rel (0) target = $region13
    $region12: #{tpu_custom_call.1} parent=1 // pred_region
      _
    $region13: #{tpu_custom_call.1} parent=1 // pred_fallthru
      _
    // Predicated region
    $region14: #{tpu_custom_call.1} parent=1 // pred_check
      _
    $region15: #{tpu_custom_call.1} parent=1 // pred_check_branch
      %20 = sbr.rel (0) target = $region17
    $region16: #{tpu_custom_call.1} parent=1 // pred_region
      _
    $region17: #{tpu_custom_call.1} parent=1 // pred_fallthru
      _
    // Predicated region
    $region18: #{tpu_custom_call.1} parent=1 // pred_check
      _
    $region19: #{tpu_custom_call.1} parent=1 // pred_check_branch
      %22 = sbr.rel (0) target = $region21
    $region20: #{tpu_custom_call.1} parent=1 // pred_region
      _
    $region21: #{tpu_custom_call.1} parent=1 // pred_fallthru
      _
    // Predicated region
    $region22: #{tpu_custom_call.1} parent=1 // pred_check
      _
    $region23: #{tpu_custom_call.1} parent=1 // pred_check_branch
      %24 = sbr.rel (0) target = $region25
    $region24: #{tpu_custom_call.1} parent=1 // pred_region
      _
    $region25: #{tpu_custom_call.1} parent=1 // pred_fallthru
      _
    // Predicated region
    $region26: #{tpu_custom_call.1} parent=1 // pred_check
      _
    $region27: #{tpu_custom_call.1} parent=1 // pred_check_branch
      %26 = sbr.rel (0) target = $region29
    $region28: #{tpu_custom_call.1} parent=1 // pred_region
      _
    $region29: #{tpu_custom_call.1} parent=1 // pred_fallthru
      _
    %v27 = vld [vmem:[%s0] sm:$0xff]
    %v28 = vld [vmem:[%s0 + $0x8] sm:$0xff]
    %v29 = vld [vmem:[%s1] sm:$0x1]
    %v30 = vld [vmem:[%s2] sm:$0x1]
    %vm31 = vcmask 261120
    %v32 = vsel %vm31, %v27, 0.0
    %33 = vadd.xlane.f32.xlu0 %v32
    %v34 = vpop.xlane.xlu0 %33
    %v35 = vsel %vm31, %v28, 0.0
    %36 = vadd.xlane.f32.xlu0 %v35
    %v37 = vpop.xlane.xlu0 %36
    %v38 = vrcp.pop 32.0
    %v39 = vmul.f32 %v34, %v38
    %v40 = vmul.f32 %v37, %v38
    %v41 = vsub.f32 %v27, %v39
    %v42 = vsub.f32 %v28, %v40
    %v43 = vmul.f32 %v41, %v41
    %v44 = vmul.f32 %v42, %v42
    %v45 = vsel %vm31, %v43, 0.0
    %46 = vadd.xlane.f32.xlu0 %v45
    %v47 = vpop.xlane.xlu0 %46
    %v48 = vsel %vm31, %v44, 0.0
    %49 = vadd.xlane.f32.xlu0 %v48
    %v50 = vpop.xlane.xlu0 %49
    %v51 = vmul.f32 %v47, %v38
    %v52 = vmul.f32 %v50, %v38
    %v53 = vadd.f32 %v51, 1e-05
    %v54 = vadd.f32 %v52, 1e-05
    %v55 = vrsqrt.pop %v53
    %v56 = vrsqrt.pop %v54
    %v57 = vmul.f32 %v41, %v55
    %v58 = vmul.f32 %v42, %v56
    %v60 = vlaneseq
    %v61 = vshrl.u32 %v60, 7
    %v62 = vsub.s32 0, %v61
    %v63 = vrot.slane %v29, %v62
    %v65 = vmul.f32 %v57, %v63
    %v66 = vmul.f32 %v58, %v63
    %v68 = vlaneseq
    %v69 = vshrl.u32 %v68, 7
    %v70 = vsub.s32 0, %v69
    %v71 = vrot.slane %v30, %v70
    %v73 = vadd.f32 %v65, %v71
    %v74 = vadd.f32 %v66, %v71
    %v75 = vld [vmem:[%s3] sm:$0xff]
    %v76 = vld [vmem:[%s3 + $0x8] sm:$0xff]
    %v77 = vld [vmem:[%s3 + $0x10] sm:$0xff]
    %v78 = vld [vmem:[%s3 + $0x18] sm:$0xff]
    %v79 = vld [vmem:[%s4] sm:$0x1]
    %v81 = vlaneseq
    %v82 = vshrl.u32 %v81, 7
    %v83 = vsub.s32 0, %v82
    %v84 = vrot.slane %v79, %v83
    %v87 = vsel %vm31, %v73, 0
    %v90 = vsel %vm31, %v74, 0
    %92 = vmatprep.subr.mxu0 0.0
    %93 = vmatpush1.msra.mxu0 0.0
    %94 = vmatprep.subr.mxu0 0.0
    %95 = vmatpush1.msra.mxu0 0.0
    %96 = vmatprep.subr.mxu0 0.0
    %97 = vmatpush1.msra.mxu0 0.0
    %98 = vmatprep.subr.mxu0 0.0
    %99 = vmatpush1.msra.mxu0 0.0
    %100 = vmatprep.subr.mxu0 0.0
    %101 = vmatpush1.msra.mxu0 0.0
    %102 = vmatprep.subr.mxu0 0.0
    %103 = vmatpush1.msra.mxu0 0.0
    %104 = vmatprep.subr.mxu0 0.0
    %105 = vmatpush1.msra.mxu0 0.0
    %106 = vmatprep.subr.mxu0 0.0
    %107 = vmatpush1.msra.mxu0 0.0
    %108 = vmatprep.subr.mxu0 0.0
    %109 = vmatpush1.msra.mxu0 0.0
    %110 = vmatprep.subr.mxu0 0.0
    %111 = vmatpush1.msra.mxu0 0.0
    %112 = vmatprep.subr.mxu0 0.0
    %113 = vmatpush1.msra.mxu0 0.0
    %114 = vmatprep.subr.mxu0 0.0
    %115 = vmatpush1.msra.mxu0 0.0
    %116 = vmatprep.subr.mxu0 0.0
    %117 = vmatpush1.msra.mxu0 %v78
    %118 = vmatprep.subr.mxu0 0.0
    %119 = vmatpush1.msra.mxu0 %v77
    %120 = vmatprep.subr.mxu0 0.0
    %121 = vmatpush1.msra.mxu0 %v76
    %122 = vmatprep.subr.mxu0 0.0
    %123 = vmatpush1.msra.mxu0 %v75
    %124 = vmatprep.subr.mxu0 0.0
    %125 = vmatpush2.msra.mxu0 0.0
    %126 = vmatprep.subr.mxu0 0.0
    %127 = vmatpush2.msra.mxu0 0.0
    %128 = vmatprep.subr.mxu0 0.0
    %129 = vmatpush2.msra.mxu0 0.0
    %130 = vmatprep.subr.mxu0 0.0
    %131 = vmatpush2.msra.mxu0 0.0
    %132 = vmatprep.subr.mxu0 0.0
    %133 = vmatpush2.msra.mxu0 0.0
    %134 = vmatprep.subr.mxu0 0.0
    %135 = vmatpush2.msra.mxu0 0.0
    %136 = vmatprep.subr.mxu0 0.0
    %137 = vmatpush2.msra.mxu0 0.0
    %138 = vmatprep.subr.mxu0 0.0
    %139 = vmatpush2.msra.mxu0 0.0
    %140 = vmatprep.subr.mxu0 0.0
    %141 = vmatpush2.msra.mxu0 0.0
    %142 = vmatprep.subr.mxu0 0.0
    %143 = vmatpush2.msra.mxu0 0.0
    %144 = vmatprep.subr.mxu0 0.0
    %145 = vmatpush2.msra.mxu0 0.0
    %146 = vmatprep.subr.mxu0 0.0
    %147 = vmatpush2.msra.mxu0 0.0
    %148 = vmatprep.subr.mxu0 0.0
    %149 = vmatpush2.msra.mxu0 0.0
    %150 = vmatprep.subr.mxu0 0.0
    %151 = vmatpush2.msra.mxu0 0.0
    %152 = vmatprep.subr.mxu0 0.0
    %153 = vmatpush2.msra.mxu0 0.0
    %154 = vmatprep.subr.mxu0 0.0
    %155 = vmatpush2.msra.mxu0 0.0
    %156 = vmatprep.mubr.f32.mxu0 0.0
    %157 = vmatmul.mubr.f32.gmra.mxu0 %v87
    %v158 = vpop.f32.mrf.mxu0
    %v159 = vadd.f32 %v84, %v158
    %v160 = vpop.f32.mrf.mxu0
    %161 = vmatprep.mubr.f32.mxu0 0.0
    %162 = vmatmul.mubr.f32.gmra.mxu0 %v90
    %v163 = vpop.f32.mrf.mxu0
    %v164 = vadd.f32 %v84, %v163
    %v165 = vpop.f32.mrf.mxu0
    %166 = vdwg.mxu0
    %v167 = vmul.f32 %v159, %v159
    %v168 = vmul.f32 %v164, %v164
    %v169 = vmul.f32 %v159, %v167
    %v170 = vmul.f32 %v164, %v168
    %v171 = vmul.f32 %v169, 0.044715
    %v172 = vmul.f32 %v170, 0.044715
    %v173 = vadd.f32 %v159, %v171
    %v174 = vadd.f32 %v164, %v172
    %v175 = vmul.f32 %v173, 0.7978846
    %v176 = vmul.f32 %v174, 0.7978846
    %v177 = vtanh.pop %v175
    %v178 = vtanh.pop %v176
    %v179 = vadd.f32 %v177, 1.0
    %v180 = vadd.f32 %v178, 1.0
    %v181 = vmul.f32 %v179, 0.5
    %v182 = vmul.f32 %v180, 0.5
    %v183 = vmul.f32 %v159, %v181
    %v184 = vmul.f32 %v164, %v182
    %v185 = vld [vmem:[%s5] sm:$0xff]
    %v186 = vld [vmem:[%s5 + $0x8] sm:$0xff]
    %v187 = vld [vmem:[%s5 + $0x10] sm:$0xff]
    %v188 = vld [vmem:[%s5 + $0x18] sm:$0xff]
    %v189 = vld [vmem:[%s5 + $0x20] sm:$0xff]
    %v190 = vld [vmem:[%s5 + $0x28] sm:$0xff]
    %v191 = vld [vmem:[%s5 + $0x30] sm:$0xff]
    %v192 = vld [vmem:[%s5 + $0x38] sm:$0xff]
    %v193 = vld [vmem:[%s6] sm:$0x1]
    %v195 = vlaneseq
    %v196 = vshrl.u32 %v195, 7
    %v197 = vsub.s32 0, %v196
    %v198 = vrot.slane %v193, %v197
    %vm200 = vcmask 523264
    %v202 = vsel %vm200, %v183, 0
    %v205 = vsel %vm200, %v184, 0
    %207 = vmatprep.subr.mxu0 0.0
    %208 = vmatpush1.msra.mxu0 0.0
    %209 = vmatprep.subr.mxu0 0.0
    %210 = vmatpush1.msra.mxu0 0.0
    %211 = vmatprep.subr.mxu0 0.0
    %212 = vmatpush1.msra.mxu0 0.0
    %213 = vmatprep.subr.mxu0 0.0
    %214 = vmatpush1.msra.mxu0 0.0
    %215 = vmatprep.subr.mxu0 0.0
    %216 = vmatpush1.msra.mxu0 0.0
    %217 = vmatprep.subr.mxu0 0.0
    %218 = vmatpush1.msra.mxu0 0.0
    %219 = vmatprep.subr.mxu0 0.0
    %220 = vmatpush1.msra.mxu0 0.0
    %221 = vmatprep.subr.mxu0 0.0
    %222 = vmatpush1.msra.mxu0 0.0
    %223 = vmatprep.subr.mxu0 0.0
    %224 = vmatpush1.msra.mxu0 %v192
    %225 = vmatprep.subr.mxu0 0.0
    %226 = vmatpush1.msra.mxu0 %v191
    %227 = vmatprep.subr.mxu0 0.0
    %228 = vmatpush1.msra.mxu0 %v190
    %229 = vmatprep.subr.mxu0 0.0
    %230 = vmatpush1.msra.mxu0 %v189
    %231 = vmatprep.subr.mxu0 0.0
    %232 = vmatpush1.msra.mxu0 %v188
    %233 = vmatprep.subr.mxu0 0.0
    %234 = vmatpush1.msra.mxu0 %v187
    %235 = vmatprep.subr.mxu0 0.0
    %236 = vmatpush1.msra.mxu0 %v186
    %237 = vmatprep.subr.mxu0 0.0
    %238 = vmatpush1.msra.mxu0 %v185
    %239 = vmatprep.subr.mxu0 0.0
    %240 = vmatpush2.msra.mxu0 0.0
    %241 = vmatprep.subr.mxu0 0.0
    %242 = vmatpush2.msra.mxu0 0.0
    %243 = vmatprep.subr.mxu0 0.0
    %244 = vmatpush2.msra.mxu0 0.0
    %245 = vmatprep.subr.mxu0 0.0
    %246 = vmatpush2.msra.mxu0 0.0
    %247 = vmatprep.subr.mxu0 0.0
    %248 = vmatpush2.msra.mxu0 0.0
    %249 = vmatprep.subr.mxu0 0.0
    %250 = vmatpush2.msra.mxu0 0.0
    %251 = vmatprep.subr.mxu0 0.0
    %252 = vmatpush2.msra.mxu0 0.0
    %253 = vmatprep.subr.mxu0 0.0
    %254 = vmatpush2.msra.mxu0 0.0
    %255 = vmatprep.subr.mxu0 0.0
    %256 = vmatpush2.msra.mxu0 0.0
    %257 = vmatprep.subr.mxu0 0.0
    %258 = vmatpush2.msra.mxu0 0.0
    %259 = vmatprep.subr.mxu0 0.0
    %260 = vmatpush2.msra.mxu0 0.0
    %261 = vmatprep.subr.mxu0 0.0
    %262 = vmatpush2.msra.mxu0 0.0
    %263 = vmatprep.subr.mxu0 0.0
    %264 = vmatpush2.msra.mxu0 0.0
    %265 = vmatprep.subr.mxu0 0.0
    %266 = vmatpush2.msra.mxu0 0.0
    %267 = vmatprep.subr.mxu0 0.0
    %268 = vmatpush2.msra.mxu0 0.0
    %269 = vmatprep.subr.mxu0 0.0
    %270 = vmatpush2.msra.mxu0 0.0
    %271 = vmatprep.mubr.f32.mxu0 0.0
    %272 = vmatmul.mubr.f32.gmra.mxu0 %v202
    %v273 = vpop.f32.mrf.mxu0
    %v274 = vadd.f32 %v198, %v273
    %v275 = vpop.f32.mrf.mxu0
    %276 = vmatprep.mubr.f32.mxu0 0.0
    %277 = vmatmul.mubr.f32.gmra.mxu0 %v205
    %v278 = vpop.f32.mrf.mxu0
    %v279 = vadd.f32 %v198, %v278
    %v280 = vpop.f32.mrf.mxu0
    %281 = vdwg.mxu0
    %282 = vst.msk [vmem:[#allocation2] sm:$0xff] %vm31, %v274
    %283 = vst.msk [vmem:[#allocation2 + $0x8] sm:$0xff] %vm31, %v279
    // Predicated region
    $region30: #{tpu_custom_call.1} parent=1 // pred_check
      _
    $region31: #{tpu_custom_call.1} parent=1 // pred_check_branch
      %285 = sbr.rel (0) target = $region33
    $region32: #{tpu_custom_call.1} parent=1 // pred_region
      %s287 = ssub.s32 256, 256
      %288 = vsyncadd [#allocation3], %s287
      %s289 = sshll.u32 [#allocation2], 4
      %s290 = int_to_ptr.vmem [resolvable:$true] %s289
      %295 = dma.vmem_to_hbm [thread:$0]  %s290, 256, %s7, [#allocation3], 128, 128, 8
    $region33: #{tpu_custom_call.1} parent=1 // pred_fallthru
      _
    // Predicated region
    $region34: #{tpu_custom_call.1} parent=1 // pred_check
      _
    $region35: #{tpu_custom_call.1} parent=1 // pred_check_branch
      %297 = sbr.rel (0) target = $region37
    $region36: #{tpu_custom_call.1} parent=1 // pred_region
      %298 = dma.done [#allocation3], 256
    $region37: #{tpu_custom_call.1} parent=1 // pred_fallthru
      _
    %299 = vsyncpa [#allocation3], 1

</llo_original>
